<compile_context>
chip_gen: v7x
topology: tpu7x:2x2x1
jax: 0.10.0
libtpu: 0.0.40
codegen_flags: <defaults>
</compile_context>

<pallas_src>
import functools
import math

import jax
import jax.numpy as jnp
from jax.experimental import pallas as pl
from jax.experimental.pallas import tpu as pltpu

LANE = 128


def _round_up(n, m):
    return (n + m - 1) // m * m


# ---------------------------------------------------------------------------
# Kernels
# ---------------------------------------------------------------------------
def fgm_pool_kernel(x_ref, w1_ref, b1_ref, psum_ref, *, hw, hw_tile, mask_tail):
    """Pass 1: per-HW-tile partial channel sums of h = relu(x @ W1' + b1)."""
    cp = x_ref.shape[-1]
    xb = x_ref[0].astype(jnp.bfloat16)                    # no-op if x already bf16
    h = jnp.dot(xb, w1_ref[...], preferred_element_type=jnp.float32)
    h = jnp.maximum(h + b1_ref[...], 0.0)                 # (HWt, Cp) f32

    if mask_tail:                                         # cdiv grid: zero the overhang rows
        row = (jax.lax.broadcasted_iota(jnp.int32, h.shape, 0)
               + pl.program_id(1) * hw_tile)
        h = jnp.where(row < hw, h, 0.0)

    if hw_tile % 8 == 0:
        # Fold HWt rows onto 8 sublanes with pure VPU adds; the (8 -> 1) reduction and the
        # mean / ECA / sigmoid finalize happen in plain JAX outside the kernel.
        part = jnp.sum(h.reshape(hw_tile // 8, 8, cp), axis=0)        # (8, Cp)
    else:
        part = jnp.broadcast_to(jnp.sum(h, axis=0, keepdims=True) * 0.125, (8, cp))
    psum_ref[...] = part[None, None]                      # (1, 1, 8, Cp)


def fgm_out_kernel(x_ref, att_ref, w1_ref, b1_ref, w2_ref, b2_ref, o_ref):
    """Pass 2: recompute the h tile, scale by the attention row, second GEMM, bf16 store."""
    xb = x_ref[0].astype(jnp.bfloat16)
    h = jnp.dot(xb, w1_ref[...], preferred_element_type=jnp.float32)
    h = jnp.maximum(h + b1_ref[...], 0.0)                 # (HWt, Cp) f32
    g = (h * att_ref[0]).astype(jnp.bfloat16)             # f32 scale, narrow only for the MXU
    o = jnp.dot(g, w2_ref[...], preferred_element_type=jnp.float32)
    o_ref[0] = jnp.maximum(o + b2_ref[...], 0.0).astype(o_ref.dtype)


# ---------------------------------------------------------------------------
# Spec / sizing helpers
# ---------------------------------------------------------------------------
def _detect_single_buffer():
    """Feature-detect BlockSpec(pipeline_mode=pl.Buffered(1)) once, deterministically."""
    if not hasattr(pl, "Buffered"):
        return False
    try:
        pl.BlockSpec((8, LANE), lambda b, t: (0, 0), pipeline_mode=pl.Buffered(1))
        return True
    except TypeError:
        return False


_SINGLE_BUFFER = _detect_single_buffer()


def _const_spec(*shape):
    """BlockSpec for a grid-invariant operand: same block every step, single-buffered."""
    index_map = lambda b, t: (0,) * len(shape)
    if _SINGLE_BUFFER:
        return pl.BlockSpec(shape, index_map, pipeline_mode=pl.Buffered(1))
    return pl.BlockSpec(shape, index_map)


def _cost_kwargs(flops, transcendentals, bytes_accessed):
    if hasattr(pl, "CostEstimate"):
        return dict(cost_estimate=pl.CostEstimate(
            flops=int(flops), transcendentals=int(transcendentals),
            bytes_accessed=int(bytes_accessed)))
    return {}


def _pick_hw_tile(hw, cp, requested=None):
    """HW tile: ~0.5M elements per grid step (1-2 MiB of bf16 activation), multiple of 8."""
    if requested is None:
        requested = max((512 * 1024) // cp, 256)   # Cp=128 -> 4096, 256 -> 2048, 512 -> 1024
    requested = min(requested, 4096)
    if requested >= hw:
        return hw                   # single tile: block == full dim, no alignment needed
    return max((requested // 8) * 8, 8)


def _vmem_limit(hw_tile, cp, x_bytes, o_bytes):
    """Count the real residents of the heavier pass-2 step + 25% headroom, cap at 48 MiB."""
    tile = hw_tile * cp
    per_step = tile * (2 * x_bytes + 2 * o_bytes)         # double-buffered x and out tiles
    per_step += tile * (2 + 4 + 4 + 2)                    # xb bf16, h f32, g f32, g bf16
    n_buf = 1 if _SINGLE_BUFFER else 2
    consts = 2 * cp * cp * 2 * n_buf + 8 * cp * 4 * n_buf  # W1', W2' bf16 + biases / att
    need = int((per_step + consts) * 1.25) + (2 << 20)
    return int(min(max(need, 16 << 20), 48 << 20))


# ---------------------------------------------------------------------------
# pallas_call construction
# ---------------------------------------------------------------------------
def _run(x, params, hw_tile, out_dtype):
    """x: (B, HW, Cp) f32/bf16, channel-padded to a 128 multiple.  -> (B, HW, Cp) out_dtype."""
    w1, b1, m, w2, b2 = params
    B, HW, Cp = x.shape
    HWt = _pick_hw_tile(HW, Cp, hw_tile)
    n_t = pl.cdiv(HW, HWt)
    mask_tail = (HW % HWt) != 0
    x_bytes = jnp.dtype(x.dtype).itemsize
    o_bytes = jnp.dtype(out_dtype).itemsize
    vmem_limit = _vmem_limit(HWt, Cp, x_bytes, o_bytes)

    x_spec = pl.BlockSpec((1, HWt, Cp), lambda b, t: (b, t, 0))

    pool = pl.pallas_call(
        functools.partial(fgm_pool_kernel, hw=HW, hw_tile=HWt, mask_tail=mask_tail),
        out_shape=jax.ShapeDtypeStruct((B, n_t, 8, Cp), jnp.float32),
        grid=(B, n_t),
        in_specs=[
            x_spec,                    # x tile (f32 or bf16)
            _const_spec(Cp, Cp),       # W1' (bf16, BN scale folded)
            _const_spec(1, Cp),        # b1  (f32)
        ],
        out_specs=pl.BlockSpec((1, 1, 8, Cp), lambda b, t: (b, t, 0, 0)),
        compiler_params=pltpu.CompilerParams(
            dimension_semantics=("parallel", "parallel"),
            vmem_limit_bytes=vmem_limit),
        **_cost_kwargs(
            flops=2 * B * HW * Cp * Cp + 3 * B * HW * Cp,
            transcendentals=0,
            bytes_accessed=B * HW * Cp * x_bytes + Cp * Cp * 2 + B * n_t * 8 * Cp * 4),
    )

    main = pl.pallas_call(
        fgm_out_kernel,
        out_shape=jax.ShapeDtypeStruct((B, HW, Cp), out_dtype),
        grid=(B, n_t),
        in_specs=[
            x_spec,                                            # x tile (f32 or bf16)
            pl.BlockSpec((1, 1, Cp), lambda b, t: (b, 0, 0)),  # attention row (f32, lane-dense)
            _const_spec(Cp, Cp),                               # W1' (bf16)
            _const_spec(1, Cp),                                # b1  (f32)
            _const_spec(Cp, Cp),                               # W2' (bf16, BN scale folded)
            _const_spec(1, Cp),                                # b2  (f32)
        ],
        out_specs=pl.BlockSpec((1, HWt, Cp), lambda b, t: (b, t, 0)),
        compiler_params=pltpu.CompilerParams(
            dimension_semantics=("parallel", "parallel"),
            vmem_limit_bytes=vmem_limit),
        **_cost_kwargs(
            flops=4 * B * HW * Cp * Cp + 5 * B * HW * Cp,
            transcendentals=0,
            bytes_accessed=B * HW * Cp * (x_bytes + o_bytes) + 2 * Cp * Cp * 2 + B * Cp * 4),
    )

    # Pass 1 + tiny finalize in plain JAX (mean over HW, ECA band-conv as a GEMV, sigmoid).
    psum = pool(x, w1, b1)                                # (B, n_t, 8, Cp) f32
    y = jnp.sum(psum, axis=(1, 2)) * (1.0 / HW)           # (B, Cp) pooled mean
    att = jax.nn.sigmoid(y @ m)[:, None, :]               # (B, 1, Cp) f32  (tiny)
    # TODO(synk): v6e / v5e-large-Cp variant that keeps h resident in VMEM (or writes h in
    # bf16 from pass 1) to avoid re-reading x and recomputing the first GEMM in pass 2.
    return main(x, att, w1, b1, w2, b2)


# ---------------------------------------------------------------------------
# Wrappers
# ---------------------------------------------------------------------------
def fine_grained_module(x_nhwc, params, *, hw_tile=None, out_dtype=jnp.bfloat16):
    """x_nhwc: (B, H, W, C) channels-last (f32 or bf16).  Returns (B, H, W, C) out_dtype.

    Prefer wiring producer/consumer layers channels-last with C a multiple of 128 and bf16
    activations: then the pad/cast below vanishes and the bf16 output feeds forward as-is."""
    B, H, W, C = x_nhwc.shape
    HW = H * W
    Cp = params[0].shape[0]

    x = x_nhwc.reshape(B, HW, C)                          # free: no data movement
    if Cp != C:
        # One copy that pads the channel dim to 128 lanes; fold the bf16 narrowing into it.
        x = jnp.pad(x.astype(jnp.bfloat16), ((0, 0), (0, 0), (0, Cp - C)))
    # else: the kernels accept f32/bf16 x directly and narrow per tile on the VPU.

    out = _run(x, params, hw_tile, out_dtype)
    if Cp != C:
        out = out[:, :, :C]
    return out.reshape(B, H, W, C)


def fine_grained_module_nchw(x_nchw, params, *, hw_tile=None, out_dtype=jnp.bfloat16):
    """Adapter for PyTorch-style NCHW inputs (each transpose is an extra HBM round trip)."""
    out = fine_grained_module(jnp.transpose(x_nchw, (0, 2, 3, 1)), params,
                              hw_tile=hw_tile, out_dtype=out_dtype)
    return jnp.transpose(out, (0, 3, 1, 2))


# ---------------------------------------------------------------------------
# Parameters (deterministic, matching FineGrainedModule.__init__ shapes)
# ---------------------------------------------------------------------------
def make_params(channel, key, b=1, gamma=2):
    C = channel
    Cp = _round_up(C, LANE)
    k = int(abs((math.log(C, 2) + b) / gamma))
    k = k if k % 2 else k + 1
    pad = (k - 1) // 2

    k1, k2, k3 = jax.random.split(key, 3)
    w1 = jax.random.normal(k1, (C, C), jnp.float32) * 0.2    # conv_pre 1x1 (Cout, Cin)
    w2 = jax.random.normal(k2, (C, C), jnp.float32) * 0.2    # conv_next 1x1
    wk = jax.random.normal(k3, (k,), jnp.float32) * 0.5      # ECA Conv1d kernel

    # BatchNorm2d (eval mode) -> per-channel scale/bias
    eps = 1e-5
    g1 = jnp.linspace(0.5, 1.5, C, dtype=jnp.float32)
    be1 = jnp.linspace(-0.1, 0.1, C, dtype=jnp.float32)
    mu1 = jnp.linspace(-0.2, 0.2, C, dtype=jnp.float32)
    var1 = jnp.linspace(0.5, 1.5, C, dtype=jnp.float32)
    s1 = g1 / jnp.sqrt(var1 + eps)
    b1_ = be1 - mu1 * s1

    g2 = jnp.linspace(1.2, 0.8, C, dtype=jnp.float32)
    be2 = jnp.linspace(0.05, -0.05, C, dtype=jnp.float32)
    mu2 = jnp.linspace(0.1, -0.1, C, dtype=jnp.float32)
    var2 = jnp.linspace(0.9, 1.1, C, dtype=jnp.float32)
    s2 = g2 / jnp.sqrt(var2 + eps)
    b2_ = be2 - mu2 * s2

    # ECA 1-D cross-correlation as a banded (C, C) matrix: att = sigmoid(y @ M).
    idx = jnp.arange(C)
    diff = idx[:, None] - idx[None, :] + pad
    valid = (diff >= 0) & (diff < k)
    M = jnp.where(valid, wk[jnp.clip(diff, 0, k - 1)], 0.0).astype(jnp.float32)

    def pad2(a):
        return jnp.pad(a, ((0, Cp - a.shape[0]), (0, Cp - a.shape[1])))

    def pad_row(a):
        return jnp.pad(a.reshape(1, C), ((0, 0), (0, Cp - C)))

    # Fold BN scales into the 1x1 conv weights; transpose to (Cin, Cout) for x @ W.
    # Padded rows/cols/biases are exactly zero -> padded lanes stay exactly 0 (see header).
    w1t_s = pad2(w1.T * s1[None, :]).astype(jnp.bfloat16)    # MXU operand
    w2t_s = pad2(w2.T * s2[None, :]).astype(jnp.bfloat16)    # MXU operand (att scales h now)
    params = (w1t_s, pad_row(b1_), pad2(M), w2t_s, pad_row(b2_))
    raw = (w1, w2, M, s1, b1_, s2, b2_)
    return params, raw


def reference(x_nhwc, raw):
    """Pure-JAX f32 reference of the forward pass (eval-mode BN), channels-last."""
    w1, w2, M, s1, b1_, s2, b2_ = raw
    B, H, W, C = x_nhwc.shape
    xr = x_nhwc.reshape(B, H * W, C)
    h = jnp.maximum(xr @ w1.T * s1 + b1_, 0.0)
    y = h.mean(axis=1)                       # adaptive avg-pool
    att = jax.nn.sigmoid(y @ M)              # ECA conv1d + sigmoid
    g = h * att[:, None, :]
    o = jnp.maximum(g @ w2.T * s2 + b2_, 0.0)
    return o.reshape(B, H, W, C)


if __name__ == "__main__":
    B, C, H, W = 2, 16, 16, 16
    key = jax.random.PRNGKey(0)
    kx, kp = jax.random.split(key)
    # channels-last end-to-end (use fine_grained_module_nchw for NCHW tensors)
    x = jax.random.normal(kx, (B, H, W, C), jnp.float32)

    params, raw = make_params(C, kp)
    ref = reference(x, raw)

    # default config: adaptive tile -> single whole-HW tile per batch at this size
    out1 = jax.block_until_ready(fine_grained_module(x, params))
    # forced small non-dividing tile: exercises the cdiv grid + masked-tail pooling path
    out2 = jax.block_until_ready(fine_grained_module(x, params, hw_tile=96))

    for out in (out1, out2):
        assert out.shape == (B, H, W, C)
        o = out.astype(jnp.float32)
        err = float(jnp.max(jnp.abs(o - ref)))
        # bf16 MXU operands + bf16 output store -> looser tolerance than pure f32
        assert jnp.allclose(o, ref, atol=6e-2, rtol=6e-2), \
            f"mismatch vs reference, max abs err {err:.4e}"

    print("KERNEL_OK")
</pallas_src>

<mosaic_0001>
module attributes {stable_mosaic.version = 11 : i64} {
  func.func @fgm_pool_kernel(%arg0: i32, %arg1: i32, %arg2: memref<1x256x128xbf16, #tpu.memory_space<vmem>>, %arg3: memref<128x128xbf16, #tpu.memory_space<vmem>>, %arg4: memref<1x128xf32, #tpu.memory_space<vmem>>, %arg5: memref<1x1x8x128xf32, #tpu.memory_space<vmem>>) attributes {dimension_semantics = [#tpu.dimension_semantics<parallel>, #tpu.dimension_semantics<parallel>], iteration_bounds = array<i64: 2, 1>, scalar_prefetch = 0 : i64, scratch_operands = 0 : i64, tpu.core_type = #tpu.core_type<tc>, window_params = [{transform_indices = @transform_0, window_bounds = array<i64: 1, 256, 128>}, {pipeline_mode = #tpu.pipeline_mode<synchronous>, transform_indices = @transform_1, window_bounds = array<i64: 128, 128>}, {pipeline_mode = #tpu.pipeline_mode<synchronous>, transform_indices = @transform_2, window_bounds = array<i64: 1, 128>}, {transform_indices = @transform_3, window_bounds = array<i64: 1, 1, 8, 128>}]} {
    %c0 = arith.constant 0 : index
    %c0_0 = arith.constant 0 : index
    %c0_1 = arith.constant 0 : index
    %0 = vector.load %arg2[%c0, %c0_0, %c0_1] : memref<1x256x128xbf16, #tpu.memory_space<vmem>>, vector<1x256x128xbf16>
    %1 = vector.shape_cast %0 : vector<1x256x128xbf16> to vector<256x128xbf16>
    %c0_2 = arith.constant 0 : index
    %c0_3 = arith.constant 0 : index
    %2 = vector.load %arg3[%c0_2, %c0_3] : memref<128x128xbf16, #tpu.memory_space<vmem>>, vector<128x128xbf16>
    %cst = arith.constant dense<0.000000e+00> : vector<256x128xf32>
    %3 = tpu.matmul %1, %2, %cst {dimension_numbers = #tpu.dot_dimension_numbers<[1], [0], [0], [1], [0, 0, 1, 1], [], []>} : vector<256x128xbf16>, vector<128x128xbf16>, vector<256x128xf32> -> vector<256x128xf32>
    %c0_4 = arith.constant 0 : index
    %c0_5 = arith.constant 0 : index
    %4 = vector.load %arg4[%c0_4, %c0_5] : memref<1x128xf32, #tpu.memory_space<vmem>>, vector<1x128xf32>
    %5 = vector.broadcast %4 : vector<1x128xf32> to vector<256x128xf32>
    %6 = arith.addf %3, %5 : vector<256x128xf32>
    %cst_6 = arith.constant 0.000000e+00 : f32
    %7 = vector.broadcast %cst_6 : f32 to vector<256x128xf32>
    %8 = arith.maximumf %6, %7 : vector<256x128xf32>
    %9 = vector.shape_cast %8 : vector<256x128xf32> to vector<32x8x128xf32>
    %cst_7 = arith.constant dense<0.000000e+00> : vector<8x128xf32>
    %10 = vector.multi_reduction <add>, %9, %cst_7 [0] : vector<32x8x128xf32> to vector<8x128xf32>
    %11 = vector.shape_cast %10 : vector<8x128xf32> to vector<1x1x8x128xf32>
    %c0_8 = arith.constant 0 : index
    %c0_9 = arith.constant 0 : index
    %c0_10 = arith.constant 0 : index
    %c0_11 = arith.constant 0 : index
    %12 = vector.load %arg5[%c0_8, %c0_9, %c0_10, %c0_11] : memref<1x1x8x128xf32, #tpu.memory_space<vmem>>, vector<1x1x8x128xf32>
    tpu.vector_store %arg5[%c0_8, %c0_9, %c0_10, %c0_11], %11 {strides = array<i32>} : memref<1x1x8x128xf32, #tpu.memory_space<vmem>>, vector<1x1x8x128xf32>,
    return
  }
  func.func @transform_0(%arg0: i32, %arg1: i32) -> (i32, i32, i32) {
    %c0_i32 = arith.constant 0 : i32
    %c0_i32_0 = arith.constant 0 : i32
    return %arg0, %arg1, %c0_i32 : i32, i32, i32
  }
  func.func @transform_1(%arg0: i32, %arg1: i32) -> (i32, i32) {
    %c0_i32 = arith.constant 0 : i32
    %c0_i32_0 = arith.constant 0 : i32
    %c0_i32_1 = arith.constant 0 : i32
    return %c0_i32, %c0_i32_0 : i32, i32
  }
  func.func @transform_2(%arg0: i32, %arg1: i32) -> (i32, i32) {
    %c0_i32 = arith.constant 0 : i32
    %c0_i32_0 = arith.constant 0 : i32
    %c0_i32_1 = arith.constant 0 : i32
    return %c0_i32, %c0_i32_0 : i32, i32
  }
  func.func @transform_3(%arg0: i32, %arg1: i32) -> (i32, i32, i32, i32) {
    %c0_i32 = arith.constant 0 : i32
    %c0_i32_0 = arith.constant 0 : i32
    %c0_i32_1 = arith.constant 0 : i32
    return %arg0, %arg1, %c0_i32, %c0_i32_0 : i32, i32, i32, i32
  }
}

</mosaic_0001>

<llo_original>
// kernel: tpu_custom_call.1
$region0: #{tpu_custom_call.1}
  #allocation0 [shape = 'u32[]', space=smem, size = 0x4, offset = 0x4, fixed_abs, tag = 'smem constant byte address 0x4 - core index']
  #allocation1 [shape = 'u32[144,128]{1,0:T(1,128)}', space=vmem, size = 0x12000, scoped, tag = 'internal scratch']
  %s0 = inlined_call_operand.hbm [shape: bf16[2,256,128], index: 0, kind: input, shape index: {}]
  %s1 = inlined_call_operand.hbm [shape: bf16[128,128], index: 1, kind: input, shape index: {}]
  %s2 = inlined_call_operand.vmem [shape: f32[1,128], index: 2, kind: input, shape index: {}]
  %s3 = inlined_call_operand.hbm [shape: f32[2,1,8,128], index: 3, kind: output, shape index: {}]
  %s4 = sld [smem:[#allocation0]]
  $region53: #{tpu_custom_call.1} parent=0
    _
  %s6 = ssub.s32 1, %s4
  %s7 = scalar_select 0, %s6, %s4
  $region1: #{tpu_custom_call.1} parent=0
    #allocation2 [shape = 'u8[131072]{0}', space=vmem, size = 0x20000, scoped, tag = 'input window, operand 0']
    #allocation3 [shape = 's32[2]{0}', space=sflag, size = 0x8, scoped, tag = 'scoped memory for tpu_custom_call.1']
    #allocation4 [shape = 's32[2]{0}', space=sflag, size = 0x8, scoped, tag = 'scoped memory for tpu_custom_call.1']
    #allocation5 [shape = 'u8[32768]{0}', space=vmem, size = 0x8000, scoped, tag = 'input window, operand 1, single buffered']
    #allocation6 [shape = 's32[1]{0}', space=sflag, size = 0x4, scoped, tag = 'scoped memory for tpu_custom_call.1']
    #allocation7 [shape = 'u8[8192]{0}', space=vmem, size = 0x2000, scoped, tag = 'output window, operand 0']
    %8 = vsyncpa [#allocation3], 0
    %s9 = scalar_lea.sflag [#allocation3], 1
    %10 = vsyncpa %s9, 0
    %11 = vsyncpa [#allocation6], 0
    %12 = vsyncpa [#allocation4], 0
    %s13 = scalar_lea.sflag [#allocation4], 1
    %14 = vsyncpa %s13, 0
    loop: start=0, step=1, limit=4
    $region2: #{tpu_custom_call.1} parent=1 // loop_pre_header
      _
    $region3: #{tpu_custom_call.1} parent=1 // loop_header
      %s16 = sphi 0, %s20
      %p17 = scmp.ge.s32.totalorder %s16, 4
      %s23 = sphi 0, %s35
      %s24 = sphi 0, %s31
      %s25 = sphi 0, %s23
      %s26 = sphi 0, %s24
      %s27 = sphi 0, %s25
      %s28 = sphi 0, %s26
      %s40 = sphi 0, %s42
      %s43 = sphi 0, %s40
      %s44 = sphi 0, %s43
      %s60 = sphi 0, %s44
      %s64 = sphi 0, %s64
      %s66 = sphi 0, %s64
      %s67 = sphi 0, %s66
      %s81 = sphi 0, %s67
      %s85 = sphi 0, %s85
      %s87 = sphi 0, %s85
      %s88 = sphi 0, %s87
      %s102 = sphi 0, %s88
      %s110 = sphi 0, %s112
      %s113 = sphi 0, %s110
      %s114 = sphi 0, %s113
      %s130 = sphi 0, %s114
    $region4: #{tpu_custom_call.1} parent=1 // loop_header_branch
      %19 = sbr.rel (%p17) target = $region8
    $region5: #{tpu_custom_call.1} parent=1 // loop_body
      %s21 = ssub.s32 %s16, 1
      %s22 = ssub.s32 %s16, 2
      %s29 = sadd.s32 1, %s24
      %p30 = scmp.ge.s32.totalorder %s29, 1
      %s31 = scalar_select %p30, 0, %s29
      %s32 = sadd.s32 1, %s23
      %s33 = scalar_select %p30, %s32, %s23
      %p34 = scmp.ge.s32.totalorder %s33, 2
      %s35 = scalar_select %p34, 0, %s33
      %s36 = ssub.s32 %s23, %s35
      %s37 = ssub.s32 %s24, %s31
      %s38 = sor.u32 %s36, %s37
      %p39 = scmp.eq.s32.totalorder %s38, 0
      %s41 = sadd.s32 %s40, 1
      %s42 = scalar_select %p39, %s40, %s41
      %p45 = pneg %p39
      %p46 = scmp.eq.s32.totalorder %s16, 1
      %p47 = por %p45, %p46
      %p48 = scmp.ne.s32.totalorder %s40, %s43
      %p49 = scmp.eq.s32.totalorder %s16, 0
      %p50 = por %p48, %p49
      %p51 = scmp.ne.s32.totalorder %s40, %s43
      %p52 = scmp.eq.s32.totalorder %s21, 1
      %p53 = por %p51, %p52
      %p54 = scmp.ne.s32.totalorder %s43, %s44
      %p55 = scmp.eq.s32.totalorder %s21, 0
      %p56 = por %p54, %p55
      %p57 = scmp.ne.s32.totalorder %s43, %s44
      %p58 = scmp.eq.s32.totalorder %s22, 1
      %p59 = por %p57, %p58
      %p61 = scmp.ne.s32.totalorder %s44, %s60
      %p62 = scmp.eq.s32.totalorder %s22, 0
      %p63 = por %p61, %p62
      %s65 = sadd.s32 %s64, 1
      %p68 = scmp.eq.s32.totalorder %s16, 1
      %p69 = scmp.ne.s32.totalorder %s64, %s66
      %p70 = scmp.eq.s32.totalorder %s16, 0
      %p71 = por %p69, %p70
      %p72 = scmp.ne.s32.totalorder %s64, %s66
      %p73 = scmp.eq.s32.totalorder %s21, 1
      %p74 = por %p72, %p73
      %p75 = scmp.ne.s32.totalorder %s66, %s67
      %p76 = scmp.eq.s32.totalorder %s21, 0
      %p77 = por %p75, %p76
      %p78 = scmp.ne.s32.totalorder %s66, %s67
      %p79 = scmp.eq.s32.totalorder %s22, 1
      %p80 = por %p78, %p79
      %p82 = scmp.ne.s32.totalorder %s67, %s81
      %p83 = scmp.eq.s32.totalorder %s22, 0
      %p84 = por %p82, %p83
      %s86 = sadd.s32 %s85, 1
      %p89 = scmp.eq.s32.totalorder %s16, 1
      %p90 = scmp.ne.s32.totalorder %s85, %s87
      %p91 = scmp.eq.s32.totalorder %s16, 0
      %p92 = por %p90, %p91
      %p93 = scmp.ne.s32.totalorder %s85, %s87
      %p94 = scmp.eq.s32.totalorder %s21, 1
      %p95 = por %p93, %p94
      %p96 = scmp.ne.s32.totalorder %s87, %s88
      %p97 = scmp.eq.s32.totalorder %s21, 0
      %p98 = por %p96, %p97
      %p99 = scmp.ne.s32.totalorder %s87, %s88
      %p100 = scmp.eq.s32.totalorder %s22, 1
      %p101 = por %p99, %p100
      %p103 = scmp.ne.s32.totalorder %s88, %s102
      %p104 = scmp.eq.s32.totalorder %s22, 0
      %p105 = por %p103, %p104
      %s106 = ssub.s32 %s23, %s35
      %s107 = ssub.s32 %s24, %s31
      %s108 = sor.u32 %s106, %s107
      %p109 = scmp.eq.s32.totalorder %s108, 0
      %s111 = sadd.s32 %s110, 1
      %s112 = scalar_select %p109, %s110, %s111
      %p115 = pneg %p109
      %p116 = scmp.eq.s32.totalorder %s16, 1
      %p117 = por %p115, %p116
      %p118 = scmp.ne.s32.totalorder %s110, %s113
      %p119 = scmp.eq.s32.totalorder %s16, 0
      %p120 = por %p118, %p119
      %p121 = scmp.ne.s32.totalorder %s110, %s113
      %p122 = scmp.eq.s32.totalorder %s21, 1
      %p123 = por %p121, %p122
      %p124 = scmp.ne.s32.totalorder %s113, %s114
      %p125 = scmp.eq.s32.totalorder %s21, 0
      %p126 = por %p124, %p125
      %p127 = scmp.ne.s32.totalorder %s113, %s114
      %p128 = scmp.eq.s32.totalorder %s22, 1
      %p129 = por %p127, %p128
      %p131 = scmp.ne.s32.totalorder %s114, %s130
      %p132 = scmp.eq.s32.totalorder %s22, 0
      %p133 = por %p131, %p132
      %p134 = scmp.le.s32.totalorder 1, %s16
      %p135 = scmp.lt.s32.totalorder %s16, 3
      %p136 = pnand %p134, %p135
      %p137 = pneg %p136
      // Predicated region
      $region9: #{tpu_custom_call.1} parent=5 // pred_check
        _
      $region10: #{tpu_custom_call.1} parent=5 // pred_check_branch
        %139 = sbr.rel (%p136) target = $region12
      $region11: #{tpu_custom_call.1} parent=5 // pred_region
        %s140 = ssub.s32 %s16, 1
        // Predicated region
        $region13: #{tpu_custom_call.1} parent=11 // pred_check
          %p141 = pneg %p77
        $region14: #{tpu_custom_call.1} parent=11 // pred_check_branch
          %143 = sbr.rel (%p141) target = $region16
        $region15: #{tpu_custom_call.1} parent=11 // pred_region
          %s145 = ssub.s32 1024, 1024
          %146 = vsyncadd [#allocation6], %s145
          %s147 = sshll.u32 [#allocation5], 4
          %s148 = int_to_ptr.vmem [resolvable:$true] %s147
          %153 = dma.hbm_to_vmem [thread:$0]  %s1, 1024, %s148, [#allocation6], 64, 64, 4
        $region16: #{tpu_custom_call.1} parent=11 // pred_fallthru
          _
        // Predicated region
        $region17: #{tpu_custom_call.1} parent=11 // pred_check
          %p154 = pneg %p98
        $region18: #{tpu_custom_call.1} parent=11 // pred_check_branch
          %156 = sbr.rel (%p154) target = $region20
        $region19: #{tpu_custom_call.1} parent=11 // pred_region
          _
        $region20: #{tpu_custom_call.1} parent=11 // pred_fallthru
          _
      $region12: #{tpu_custom_call.1} parent=5 // pred_fallthru
        _
      %p157 = scmp.lt.s32.totalorder %s16, 2
      // Predicated region
      $region21: #{tpu_custom_call.1} parent=5 // pred_check
        %p158 = pneg %p157
      $region22: #{tpu_custom_call.1} parent=5 // pred_check_branch
        %160 = sbr.rel (%p158) target = $region24
      $region23: #{tpu_custom_call.1} parent=5 // pred_region
        // Predicated region
        $region25: #{tpu_custom_call.1} parent=23 // pred_check
          %p161 = pneg %p50
        $region26: #{tpu_custom_call.1} parent=23 // pred_check_branch
          %163 = sbr.rel (%p161) target = $region28
        $region27: #{tpu_custom_call.1} parent=23 // pred_region
          %s164 = sand.u32 %s40, 1
          %s165 = scalar_lea.sflag [#allocation3], %s164
          %s166 = sand.u32 %s40, 1
          %s167 = smul.addr %s166, 128
          %s168 = scalar_lea.vmem [#allocation2], %s167
          %s169 = smul.u32 32, %s24
          %s171 = ssub.s32 2048, 2048
          %172 = vsyncadd %s165, %s171
          %s173 = smul.addr %s23, 32
          %s174 = sadd.s32 %s169, %s173
          %s175 = smul.addr %s174, 64
          %s176 = scalar_lea.hbm %s0, %s175
          %s177 = sshll.u32 %s168, 4
          %s178 = int_to_ptr.vmem [resolvable:$true] %s177
          %183 = dma.hbm_to_vmem [thread:$0]  %s176, 2048, %s178, %s165, 64, 64, 4
        $region28: #{tpu_custom_call.1} parent=23 // pred_fallthru
          _
      $region24: #{tpu_custom_call.1} parent=5 // pred_fallthru
        _
      %p184 = scmp.le.s32.totalorder 1, %s16
      %p185 = scmp.lt.s32.totalorder %s16, 3
      %p186 = pnand %p184, %p185
      %p187 = pneg %p186
      // Predicated region
      $region29: #{tpu_custom_call.1} parent=5 // pred_check
        _
      $region30: #{tpu_custom_call.1} parent=5 // pred_check_branch
        %189 = sbr.rel (%p186) target = $region32
      $region31: #{tpu_custom_call.1} parent=5 // pred_region
        %s190 = ssub.s32 %s16, 1
        %s191 = sand.u32 %s43, 1
        %s192 = scalar_lea.sflag [#allocation3], %s191
        %s193 = sand.u32 %s43, 1
        %s194 = smul.addr %s193, 128
        %s195 = scalar_lea.vmem [#allocation2], %s194
        // Predicated region
        $region33: #{tpu_custom_call.1} parent=31 // pred_check
          %p196 = pneg %p56
        $region34: #{tpu_custom_call.1} parent=31 // pred_check_branch
          %198 = sbr.rel (%p196) target = $region36
        $region35: #{tpu_custom_call.1} parent=31 // pred_region
          %199 = dma.done %s192, 2048
        $region36: #{tpu_custom_call.1} parent=31 // pred_fallthru
          _
        // Predicated region
        $region37: #{tpu_custom_call.1} parent=31 // pred_check
          %p200 = pneg %p77
        $region38: #{tpu_custom_call.1} parent=31 // pred_check_branch
          %202 = sbr.rel (%p200) target = $region40
        $region39: #{tpu_custom_call.1} parent=31 // pred_region
          %203 = dma.done [#allocation6], 1024
        $region40: #{tpu_custom_call.1} parent=31 // pred_fallthru
          _
        %s204 = sand.u32 %s43, 1
        %s205 = scalar_lea.sflag [#allocation3], %s204
        %s206 = sand.u32 %s43, 1
        %s207 = smul.addr %s206, 128
        %s208 = scalar_lea.vmem [#allocation2], %s207
        %p209 = pneg %p56
        %p210 = pneg %p53
        %p211 = pneg %p77
        %p212 = pneg %p74
        %p213 = pneg %p98
        %p214 = pneg %p95
        %p215 = pneg %p126
        %p216 = pneg %p123
        %s217 = sand.u32 %s113, 1
        %s218 = scalar_lea.sflag [#allocation4], %s217
        %s219 = sand.u32 %s113, 1
        %s220 = smul.addr %s219, 8
        %s221 = scalar_lea.vmem [#allocation7], %s220
        %s222 = smul.u32 32, %s26
        %v224 = vld [vmem:[%s195] sm:$0xf]
        %v225 = vld [vmem:[%s195 + $0x4] sm:$0xf]
        %v226 = vld [vmem:[%s195 + $0x8] sm:$0xf]
        %v227 = vld [vmem:[%s195 + $0xc] sm:$0xf]
        %v228 = vld [vmem:[%s195 + $0x10] sm:$0xf]
        %v229 = vld [vmem:[%s195 + $0x14] sm:$0xf]
        %v230 = vld [vmem:[%s195 + $0x18] sm:$0xf]
        %v231 = vld [vmem:[%s195 + $0x1c] sm:$0xf]
        %v232 = vld [vmem:[%s195 + $0x20] sm:$0xf]
        %v233 = vld [vmem:[%s195 + $0x24] sm:$0xf]
        %v234 = vld [vmem:[%s195 + $0x28] sm:$0xf]
        %v235 = vld [vmem:[%s195 + $0x2c] sm:$0xf]
        %v236 = vld [vmem:[%s195 + $0x30] sm:$0xf]
        %v237 = vld [vmem:[%s195 + $0x34] sm:$0xf]
        %v238 = vld [vmem:[%s195 + $0x38] sm:$0xf]
        %v239 = vld [vmem:[%s195 + $0x3c] sm:$0xf]
        %v240 = vld [vmem:[%s195 + $0x40] sm:$0xf]
        %v241 = vld [vmem:[%s195 + $0x44] sm:$0xf]
        %v242 = vld [vmem:[%s195 + $0x48] sm:$0xf]
        %v243 = vld [vmem:[%s195 + $0x4c] sm:$0xf]
        %v244 = vld [vmem:[%s195 + $0x50] sm:$0xf]
        %v245 = vld [vmem:[%s195 + $0x54] sm:$0xf]
        %v246 = vld [vmem:[%s195 + $0x58] sm:$0xf]
        %v247 = vld [vmem:[%s195 + $0x5c] sm:$0xf]
        %v248 = vld [vmem:[%s195 + $0x60] sm:$0xf]
        %v249 = vld [vmem:[%s195 + $0x64] sm:$0xf]
        %v250 = vld [vmem:[%s195 + $0x68] sm:$0xf]
        %v251 = vld [vmem:[%s195 + $0x6c] sm:$0xf]
        %v252 = vld [vmem:[%s195 + $0x70] sm:$0xf]
        %v253 = vld [vmem:[%s195 + $0x74] sm:$0xf]
        %v254 = vld [vmem:[%s195 + $0x78] sm:$0xf]
        %v255 = vld [vmem:[%s195 + $0x7c] sm:$0xf]
        %v256 = vld [vmem:[#allocation5] sm:$0xf]
        %v257 = vld [vmem:[#allocation5 + $0x4] sm:$0xf]
        %v258 = vld [vmem:[#allocation5 + $0x8] sm:$0xf]
        %v259 = vld [vmem:[#allocation5 + $0xc] sm:$0xf]
        %v260 = vld [vmem:[#allocation5 + $0x10] sm:$0xf]
        %v261 = vld [vmem:[#allocation5 + $0x14] sm:$0xf]
        %v262 = vld [vmem:[#allocation5 + $0x18] sm:$0xf]
        %v263 = vld [vmem:[#allocation5 + $0x1c] sm:$0xf]
        %v264 = vld [vmem:[#allocation5 + $0x20] sm:$0xf]
        %v265 = vld [vmem:[#allocation5 + $0x24] sm:$0xf]
        %v266 = vld [vmem:[#allocation5 + $0x28] sm:$0xf]
        %v267 = vld [vmem:[#allocation5 + $0x2c] sm:$0xf]
        %v268 = vld [vmem:[#allocation5 + $0x30] sm:$0xf]
        %v269 = vld [vmem:[#allocation5 + $0x34] sm:$0xf]
        %v270 = vld [vmem:[#allocation5 + $0x38] sm:$0xf]
        %v271 = vld [vmem:[#allocation5 + $0x3c] sm:$0xf]
        %v272 = vld [vmem:[%s2] sm:$0x1]
        %v274 = vlaneseq
        %v275 = vshrl.u32 %v274, 7
        %v276 = vsub.s32 0, %v275
        %v277 = vrot.slane %v272, %v276
        %v311 = vunpack.c.l.b16 %v224
        %v312 = vunpack.c.l.b16 %v225
        %v313 = vunpack.c.l.b16 %v226
        %v314 = vunpack.c.l.b16 %v227
        %v315 = vunpack.c.l.b16 %v228
        %v316 = vunpack.c.l.b16 %v229
        %v317 = vunpack.c.l.b16 %v230
        %v318 = vunpack.c.l.b16 %v231
        %v319 = vunpack.c.l.b16 %v232
        %v320 = vunpack.c.l.b16 %v233
        %v321 = vunpack.c.l.b16 %v234
        %v322 = vunpack.c.l.b16 %v235
        %v323 = vunpack.c.l.b16 %v236
        %v324 = vunpack.c.l.b16 %v237
        %v325 = vunpack.c.l.b16 %v238
        %v326 = vunpack.c.l.b16 %v239
        %v327 = vunpack.c.l.b16 %v240
        %v328 = vunpack.c.l.b16 %v241
        %v329 = vunpack.c.l.b16 %v242
        %v330 = vunpack.c.l.b16 %v243
        %v331 = vunpack.c.l.b16 %v244
        %v332 = vunpack.c.l.b16 %v245
        %v333 = vunpack.c.l.b16 %v246
        %v334 = vunpack.c.l.b16 %v247
        %v335 = vunpack.c.l.b16 %v248
        %v336 = vunpack.c.l.b16 %v249
        %v337 = vunpack.c.l.b16 %v250
        %v338 = vunpack.c.l.b16 %v251
        %v339 = vunpack.c.l.b16 %v252
        %v340 = vunpack.c.l.b16 %v253
        %v341 = vunpack.c.l.b16 %v254
        %v342 = vunpack.c.l.b16 %v255
        %v343 = vpack.c.b16 %v312, %v311
        %v344 = vpack.c.b16 %v314, %v313
        %v345 = vpack.c.b16 %v316, %v315
        %v346 = vpack.c.b16 %v318, %v317
        %v347 = vpack.c.b16 %v320, %v319
        %v348 = vpack.c.b16 %v322, %v321
        %v349 = vpack.c.b16 %v324, %v323
        %v350 = vpack.c.b16 %v326, %v325
        %v351 = vpack.c.b16 %v328, %v327
        %v352 = vpack.c.b16 %v330, %v329
        %v353 = vpack.c.b16 %v332, %v331
        %v354 = vpack.c.b16 %v334, %v333
        %v355 = vpack.c.b16 %v336, %v335
        %v356 = vpack.c.b16 %v338, %v337
        %v357 = vpack.c.b16 %v340, %v339
        %v358 = vpack.c.b16 %v342, %v341
        %v391 = vunpack.c.l.b16 %v256
        %v392 = vunpack.c.l.b16 %v257
        %v393 = vunpack.c.l.b16 %v258
        %v394 = vunpack.c.l.b16 %v259
        %v395 = vunpack.c.l.b16 %v260
        %v396 = vunpack.c.l.b16 %v261
        %v397 = vunpack.c.l.b16 %v262
        %v398 = vunpack.c.l.b16 %v263
        %v399 = vunpack.c.l.b16 %v264
        %v400 = vunpack.c.l.b16 %v265
        %v401 = vunpack.c.l.b16 %v266
        %v402 = vunpack.c.l.b16 %v267
        %v403 = vunpack.c.l.b16 %v268
        %v404 = vunpack.c.l.b16 %v269
        %v405 = vunpack.c.l.b16 %v270
        %v406 = vunpack.c.l.b16 %v271
        %v407 = vpack.c.b16 %v392, %v391
        %v408 = vpack.c.b16 %v394, %v393
        %v409 = vpack.c.b16 %v396, %v395
        %v410 = vpack.c.b16 %v398, %v397
        %v411 = vpack.c.b16 %v400, %v399
        %v412 = vpack.c.b16 %v402, %v401
        %v413 = vpack.c.b16 %v404, %v403
        %v414 = vpack.c.b16 %v406, %v405
        %423 = vmatprep.subr.bf16.mxu0 0
        %424 = vmatpush1.bf16.msra.mxu0 %v407
        %425 = vmatprep.subr.bf16.mxu0 0
        %426 = vmatpush1.bf16.msra.mxu0 %v408
        %427 = vmatprep.subr.bf16.mxu0 0
        %428 = vmatpush1.bf16.msra.mxu0 %v409
        %429 = vmatprep.subr.bf16.mxu0 0
        %430 = vmatpush1.bf16.msra.mxu0 %v410
        %431 = vmatprep.subr.bf16.mxu0 0
        %432 = vmatpush1.bf16.msra.mxu0 %v411
        %433 = vmatprep.subr.bf16.mxu0 0
        %434 = vmatpush1.bf16.msra.mxu0 %v412
        %435 = vmatprep.subr.bf16.mxu0 0
        %436 = vmatpush1.bf16.msra.mxu0 %v413
        %437 = vmatprep.subr.bf16.mxu0 0
        %438 = vmatpush1.bf16.msra.mxu0 %v414
        %439 = vmatprep.subr.bf16.mxu0 0
        %440 = vmatpush1.bf16.msra.mxu0 0
        %441 = vmatprep.subr.bf16.mxu0 0
        %442 = vmatpush1.bf16.msra.mxu0 0
        %443 = vmatprep.subr.bf16.mxu0 0
        %444 = vmatpush1.bf16.msra.mxu0 0
        %445 = vmatprep.subr.bf16.mxu0 0
        %446 = vmatpush1.bf16.msra.mxu0 0
        %447 = vmatprep.subr.bf16.mxu0 0
        %448 = vmatpush1.bf16.msra.mxu0 0
        %449 = vmatprep.subr.bf16.mxu0 0
        %450 = vmatpush1.bf16.msra.mxu0 0
        %451 = vmatprep.subr.bf16.mxu0 0
        %452 = vmatpush1.bf16.msra.mxu0 0
        %453 = vmatprep.subr.bf16.mxu0 0
        %454 = vmatpush1.bf16.msra.mxu0 0
        %455 = vmatprep.mubr.bf16.mxu0 0
        %456 = vmatmul.mubr.bf16.gmra.mrb[0].mxu0 %v343
        %v457 = vpop.f32.mrb[0].mxu0
        %v458 = vadd.f32 %v277, %v457
        %v459 = vpop.f32.mrb[0].mxu0
        %v460 = vpop.f32.mrb[0].mxu0
        %v461 = vadd.f32 %v277, %v460
        %v462 = vpop.f32.mrb[0].mxu0
        %463 = vmatprep.mubr.bf16.mxu0 0
        %464 = vmatmul.mubr.bf16.gmra.mrb[0].mxu0 %v344
        %v465 = vpop.f32.mrb[0].mxu0
        %v466 = vadd.f32 %v277, %v465
        %v467 = vpop.f32.mrb[0].mxu0
        %v468 = vpop.f32.mrb[0].mxu0
        %v469 = vadd.f32 %v277, %v468
        %v470 = vpop.f32.mrb[0].mxu0
        %471 = vmatprep.mubr.bf16.mxu0 0
        %472 = vmatmul.mubr.bf16.gmra.mrb[0].mxu0 %v345
        %v473 = vpop.f32.mrb[0].mxu0
        %v474 = vadd.f32 %v277, %v473
        %v475 = vpop.f32.mrb[0].mxu0
        %v476 = vpop.f32.mrb[0].mxu0
        %v477 = vadd.f32 %v277, %v476
        %v478 = vpop.f32.mrb[0].mxu0
        %479 = vmatprep.mubr.bf16.mxu0 0
        %480 = vmatmul.mubr.bf16.gmra.mrb[0].mxu0 %v346
        %v481 = vpop.f32.mrb[0].mxu0
        %v482 = vadd.f32 %v277, %v481
        %v483 = vpop.f32.mrb[0].mxu0
        %v484 = vpop.f32.mrb[0].mxu0
        %v485 = vadd.f32 %v277, %v484
        %v486 = vpop.f32.mrb[0].mxu0
        %487 = vmatprep.mubr.bf16.mxu0 0
        %488 = vmatmul.mubr.bf16.gmra.mrb[0].mxu0 %v347
        %v489 = vpop.f32.mrb[0].mxu0
        %v490 = vadd.f32 %v277, %v489
        %v491 = vpop.f32.mrb[0].mxu0
        %v492 = vpop.f32.mrb[0].mxu0
        %v493 = vadd.f32 %v277, %v492
        %v494 = vpop.f32.mrb[0].mxu0
        %495 = vmatprep.mubr.bf16.mxu0 0
        %496 = vmatmul.mubr.bf16.gmra.mrb[0].mxu0 %v348
        %v497 = vpop.f32.mrb[0].mxu0
        %v498 = vadd.f32 %v277, %v497
        %v499 = vpop.f32.mrb[0].mxu0
        %v500 = vpop.f32.mrb[0].mxu0
        %v501 = vadd.f32 %v277, %v500
        %v502 = vpop.f32.mrb[0].mxu0
        %503 = vmatprep.mubr.bf16.mxu0 0
        %504 = vmatmul.mubr.bf16.gmra.mrb[0].mxu0 %v349
        %v505 = vpop.f32.mrb[0].mxu0
        %v506 = vadd.f32 %v277, %v505
        %v507 = vpop.f32.mrb[0].mxu0
        %v508 = vpop.f32.mrb[0].mxu0
        %v509 = vadd.f32 %v277, %v508
        %v510 = vpop.f32.mrb[0].mxu0
        %511 = vmatprep.mubr.bf16.mxu0 0
        %512 = vmatmul.mubr.bf16.gmra.mrb[0].mxu0 %v350
        %v513 = vpop.f32.mrb[0].mxu0
        %v514 = vadd.f32 %v277, %v513
        %v515 = vpop.f32.mrb[0].mxu0
        %v516 = vpop.f32.mrb[0].mxu0
        %v517 = vadd.f32 %v277, %v516
        %v518 = vpop.f32.mrb[0].mxu0
        %519 = vmatprep.mubr.bf16.mxu0 0
        %520 = vmatmul.mubr.bf16.gmra.mrb[0].mxu0 %v351
        %v521 = vpop.f32.mrb[0].mxu0
        %v522 = vadd.f32 %v277, %v521
        %v523 = vpop.f32.mrb[0].mxu0
        %v524 = vpop.f32.mrb[0].mxu0
        %v525 = vadd.f32 %v277, %v524
        %v526 = vpop.f32.mrb[0].mxu0
        %527 = vmatprep.mubr.bf16.mxu0 0
        %528 = vmatmul.mubr.bf16.gmra.mrb[0].mxu0 %v352
        %v529 = vpop.f32.mrb[0].mxu0
        %v530 = vadd.f32 %v277, %v529
        %v531 = vpop.f32.mrb[0].mxu0
        %v532 = vpop.f32.mrb[0].mxu0
        %v533 = vadd.f32 %v277, %v532
        %v534 = vpop.f32.mrb[0].mxu0
        %535 = vmatprep.mubr.bf16.mxu0 0
        %536 = vmatmul.mubr.bf16.gmra.mrb[0].mxu0 %v353
        %v537 = vpop.f32.mrb[0].mxu0
        %v538 = vadd.f32 %v277, %v537
        %v539 = vpop.f32.mrb[0].mxu0
        %v540 = vpop.f32.mrb[0].mxu0
        %v541 = vadd.f32 %v277, %v540
        %v542 = vpop.f32.mrb[0].mxu0
        %543 = vmatprep.mubr.bf16.mxu0 0
        %544 = vmatmul.mubr.bf16.gmra.mrb[0].mxu0 %v354
        %v545 = vpop.f32.mrb[0].mxu0
        %v546 = vadd.f32 %v277, %v545
        %v547 = vpop.f32.mrb[0].mxu0
        %v548 = vpop.f32.mrb[0].mxu0
        %v549 = vadd.f32 %v277, %v548
        %v550 = vpop.f32.mrb[0].mxu0
        %551 = vmatprep.mubr.bf16.mxu0 0
        %552 = vmatmul.mubr.bf16.gmra.mrb[0].mxu0 %v355
        %v553 = vpop.f32.mrb[0].mxu0
        %v554 = vadd.f32 %v277, %v553
        %v555 = vpop.f32.mrb[0].mxu0
        %v556 = vpop.f32.mrb[0].mxu0
        %v557 = vadd.f32 %v277, %v556
        %v558 = vpop.f32.mrb[0].mxu0
        %559 = vmatprep.mubr.bf16.mxu0 0
        %560 = vmatmul.mubr.bf16.gmra.mrb[0].mxu0 %v356
        %v561 = vpop.f32.mrb[0].mxu0
        %v562 = vadd.f32 %v277, %v561
        %v563 = vpop.f32.mrb[0].mxu0
        %v564 = vpop.f32.mrb[0].mxu0
        %v565 = vadd.f32 %v277, %v564
        %v566 = vpop.f32.mrb[0].mxu0
        %567 = vmatprep.mubr.bf16.mxu0 0
        %568 = vmatmul.mubr.bf16.gmra.mrb[0].mxu0 %v357
        %v569 = vpop.f32.mrb[0].mxu0
        %v570 = vadd.f32 %v277, %v569
        %v571 = vpop.f32.mrb[0].mxu0
        %v572 = vpop.f32.mrb[0].mxu0
        %v573 = vadd.f32 %v277, %v572
        %v574 = vpop.f32.mrb[0].mxu0
        %575 = vmatprep.mubr.bf16.mxu0 0
        %576 = vmatmul.mubr.bf16.gmra.mrb[0].mxu0 %v358
        %v577 = vpop.f32.mrb[0].mxu0
        %v578 = vadd.f32 %v277, %v577
        %v579 = vpop.f32.mrb[0].mxu0
        %v580 = vpop.f32.mrb[0].mxu0
        %v581 = vadd.f32 %v277, %v580
        %v582 = vpop.f32.mrb[0].mxu0
        %583 = vdwg.mxu0
        %v584 = vmax.f32 %v458, 0.0
        %v585 = vmax.f32 %v461, 0.0
        %v586 = vmax.f32 %v466, 0.0
        %v587 = vmax.f32 %v469, 0.0
        %v588 = vmax.f32 %v474, 0.0
        %v589 = vmax.f32 %v477, 0.0
        %v590 = vmax.f32 %v482, 0.0
        %v591 = vmax.f32 %v485, 0.0
        %v592 = vmax.f32 %v490, 0.0
        %v593 = vmax.f32 %v493, 0.0
        %v594 = vmax.f32 %v498, 0.0
        %v595 = vmax.f32 %v501, 0.0
        %v596 = vmax.f32 %v506, 0.0
        %v597 = vmax.f32 %v509, 0.0
        %v598 = vmax.f32 %v514, 0.0
        %v599 = vmax.f32 %v517, 0.0
        %v600 = vmax.f32 %v522, 0.0
        %v601 = vmax.f32 %v525, 0.0
        %v602 = vmax.f32 %v530, 0.0
        %v603 = vmax.f32 %v533, 0.0
        %v604 = vmax.f32 %v538, 0.0
        %v605 = vmax.f32 %v541, 0.0
        %v606 = vmax.f32 %v546, 0.0
        %v607 = vmax.f32 %v549, 0.0
        %v608 = vmax.f32 %v554, 0.0
        %v609 = vmax.f32 %v557, 0.0
        %v610 = vmax.f32 %v562, 0.0
        %v611 = vmax.f32 %v565, 0.0
        %v612 = vmax.f32 %v570, 0.0
        %v613 = vmax.f32 %v573, 0.0
        %v614 = vmax.f32 %v578, 0.0
        %v615 = vmax.f32 %v581, 0.0
        %v616 = vadd.f32 %v584, %v585
        %v617 = vadd.f32 %v616, %v586
        %v618 = vadd.f32 %v617, %v587
        %v619 = vadd.f32 %v618, %v588
        %v620 = vadd.f32 %v619, %v589
        %v621 = vadd.f32 %v620, %v590
        %v622 = vadd.f32 %v621, %v591
        %v623 = vadd.f32 %v622, %v592
        %v624 = vadd.f32 %v623, %v593
        %v625 = vadd.f32 %v624, %v594
        %v626 = vadd.f32 %v625, %v595
        %v627 = vadd.f32 %v626, %v596
        %v628 = vadd.f32 %v627, %v597
        %v629 = vadd.f32 %v628, %v598
        %v630 = vadd.f32 %v629, %v599
        %v631 = vadd.f32 %v630, %v600
        %v632 = vadd.f32 %v631, %v601
        %v633 = vadd.f32 %v632, %v602
        %v634 = vadd.f32 %v633, %v603
        %v635 = vadd.f32 %v634, %v604
        %v636 = vadd.f32 %v635, %v605
        %v637 = vadd.f32 %v636, %v606
        %v638 = vadd.f32 %v637, %v607
        %v639 = vadd.f32 %v638, %v608
        %v640 = vadd.f32 %v639, %v609
        %v641 = vadd.f32 %v640, %v610
        %v642 = vadd.f32 %v641, %v611
        %v643 = vadd.f32 %v642, %v612
        %v644 = vadd.f32 %v643, %v613
        %v645 = vadd.f32 %v644, %v614
        %v646 = vadd.f32 %v645, %v615
        %647 = vst [vmem:[%s221] sm:$0xff] %v646
        %s648 = sand.u32 %s113, 1
        %s649 = scalar_lea.sflag [#allocation4], %s648
        %s650 = sand.u32 %s113, 1
        %s651 = smul.addr %s650, 8
        %s652 = scalar_lea.vmem [#allocation7], %s651
        // Predicated region
        $region41: #{tpu_custom_call.1} parent=31 // pred_check
          %p653 = pneg %p123
        $region42: #{tpu_custom_call.1} parent=31 // pred_check_branch
          %655 = sbr.rel (%p653) target = $region44
        $region43: #{tpu_custom_call.1} parent=31 // pred_region
          %s657 = ssub.s32 128, 128
          %658 = vsyncadd %s649, %s657
          %s659 = sadd.s32 %s26, %s25
          %s660 = smul.addr %s659, 128
          %s661 = scalar_lea.hbm %s3, %s660
          %s663 = sshll.u32 %s652, 4
          %s664 = int_to_ptr.vmem [resolvable:$true] %s663
          %666 = dma.vmem_to_hbm [thread:$0]  %s664, 128, %s661, %s649
        $region44: #{tpu_custom_call.1} parent=31 // pred_fallthru
          _
      $region32: #{tpu_custom_call.1} parent=5 // pred_fallthru
        _
      %p667 = scmp.le.s32.totalorder 2, %s16
      // Predicated region
      $region45: #{tpu_custom_call.1} parent=5 // pred_check
        %p668 = pneg %p667
      $region46: #{tpu_custom_call.1} parent=5 // pred_check_branch
        %670 = sbr.rel (%p668) target = $region48
      $region47: #{tpu_custom_call.1} parent=5 // pred_region
        %s671 = ssub.s32 %s16, 2
        // Predicated region
        $region49: #{tpu_custom_call.1} parent=47 // pred_check
          %p672 = pneg %p129
        $region50: #{tpu_custom_call.1} parent=47 // pred_check_branch
          %674 = sbr.rel (%p672) target = $region52
        $region51: #{tpu_custom_call.1} parent=47 // pred_region
          %s675 = sand.u32 %s114, 1
          %s676 = scalar_lea.sflag [#allocation4], %s675
          %s677 = sand.u32 %s114, 1
          %s678 = smul.addr %s677, 8
          %s679 = scalar_lea.vmem [#allocation7], %s678
          %680 = dma.done %s676, 128
        $region52: #{tpu_custom_call.1} parent=47 // pred_fallthru
          _
      $region48: #{tpu_custom_call.1} parent=5 // pred_fallthru
        _
    $region6: #{tpu_custom_call.1} parent=1 // loop_footer
      %s20 = sadd.s32 1, %s16
    $region7: #{tpu_custom_call.1} parent=1 // loop_footer_branch
      %15 = sbr.rel target = $region3
    $region8: #{tpu_custom_call.1} parent=1 // loop_exit
      _
    %681 = vsyncpa [#allocation3], 1
    %s682 = scalar_lea.sflag [#allocation3], 1
    %683 = vsyncpa %s682, 1
    %684 = vsyncpa [#allocation6], 1
    %685 = vsyncpa [#allocation4], 1
    %s686 = scalar_lea.sflag [#allocation4], 1
    %687 = vsyncpa %s686, 1

</llo_original>
